<compile_context>
chip_gen: v7x
topology: tpu7x:2x2x1
jax: 0.10.0
libtpu: 0.0.40
codegen_flags: <defaults>
</compile_context>

<pallas_src>
import functools

import jax
import jax.numpy as jnp
from jax.experimental import pallas as pl
from jax.experimental.pallas import tpu as pltpu


def _round_up(x, m):
    return ((x + m - 1) // m) * m


# --------------------------------------------------------------------------
# Per-generation hardware config (VMEM budget, MXU M dim, core count)
# --------------------------------------------------------------------------
def _tpu_config():
    try:
        kind = jax.devices()[0].device_kind.lower()
    except Exception:  # pragma: no cover - defensive
        kind = ""
    try:
        vmem_cap = int(pltpu.get_tpu_info().vmem_capacity_bytes)
    except Exception:  # pragma: no cover - defensive
        vmem_cap = 128 << 20
    # v2-v5 generations: 128-wide MXU M dim; v6e/v7x: 256.
    mxu_m = 128 if any(t in kind for t in ("v2", "v3", "v4", "v5")) else 256
    two_cores = "v7" in kind                     # v7x: 2 TensorCores per chip
    vmem_budget = int(vmem_cap * 0.75)           # ~96 MiB v5e/v6e, ~48 MiB v7x
    return dict(vmem_budget=vmem_budget, vmem_limit=vmem_budget,
                mxu_m=mxu_m, two_cores=two_cores)


# --------------------------------------------------------------------------
# Fused kernel: [Linear + ReLU] * num_fc_layers  ->  final Linear (lane-dense)
# --------------------------------------------------------------------------
def _encoder_fc_kernel(*refs):
    """refs = (x_ref, w0, b0, ..., wL, bL, o_ref).

    Weights are pre-transposed to (in, out) and zero-padded to 128-multiples.
    The final weight is pre-permuted so mu lives in cols [0, latent) and logvar
    in [latent, 2*latent), zero-padded to the lane-dense output width.
    The hidden activation never leaves VMEM; all matmuls accumulate in f32.
    """
    x_ref, o_ref = refs[0], refs[-1]
    wb = refs[1:-1]
    n_linear = len(wb) // 2

    h = x_ref[...]
    for li in range(n_linear):
        w = wb[2 * li][...]
        b = wb[2 * li + 1][...]                  # (1, out) f32 -> broadcasts over batch
        h = jnp.dot(h.astype(w.dtype), w, preferred_element_type=jnp.float32) + b
        if li < n_linear - 1:
            h = jnp.maximum(h, 0.0)
    o_ref[...] = h.astype(o_ref.dtype)


# --------------------------------------------------------------------------
# Batch-tile picker (VMEM-budget aware, MXU-aligned, v7x 2-core aware)
# --------------------------------------------------------------------------
def _pick_batch_tile(B, in_pad, hidden_pad, out_pad, param_bytes, x_itemsize,
                     vmem_budget, mxu_m, two_cores):
    margin = 2 << 20

    def fits(tb):
        act = (2 * tb * in_pad * x_itemsize      # double-buffered x tile
               + 2 * tb * out_pad * 4            # double-buffered out tile (f32)
               + 2 * tb * hidden_pad * 4)        # in-kernel h temporaries (f32, slack x2)
        return act + param_bytes + margin <= vmem_budget

    # Upper bound: whole batch, but on a 2-core chip split the batch so both
    # TensorCores get at least one grid step.
    cap = B
    if two_cores and B >= 16:
        cap = _round_up(pl.cdiv(B, 2), 8)

    if cap >= B and fits(B):
        return B                                  # full-dim block (no (8,128) issue)

    candidates = set()
    c = mxu_m
    while c <= min(cap, 4096):
        candidates.add(c)
        c *= 2
    for tail in (128, 64, 32, 16, 8):             # last resort (underfills MXU)
        if tail < mxu_m and tail <= cap:
            candidates.add(tail)
    for tb in sorted(candidates, reverse=True):
        if fits(tb):
            return tb
    return 8


# --------------------------------------------------------------------------
# Parameters (PyTorch layout) + one-time packing into kernel layout
# --------------------------------------------------------------------------
def init_encoder_fc_params(key, input_dim, latent_dim=10, hidden_dim=256,
                           num_layers=1, dtype=jnp.float32):
    """Deterministic synthetic params in PyTorch nn.Linear layout (out, in)."""
    params = {"fc_layers": [], "mu_logvar_gen": None}
    dims_in = [input_dim] + [hidden_dim] * (num_layers - 1)
    for i in range(num_layers):
        key, kw, kb = jax.random.split(key, 3)
        fan_in = dims_in[i]
        w = jax.random.normal(kw, (hidden_dim, fan_in), dtype) * (1.0 / jnp.sqrt(fan_in))
        b = jax.random.normal(kb, (hidden_dim,), dtype) * 0.01
        params["fc_layers"].append((w, b))
    key, kw, kb = jax.random.split(key, 3)
    w = jax.random.normal(kw, (latent_dim * 2, hidden_dim), dtype) * (1.0 / jnp.sqrt(hidden_dim))
    b = jax.random.normal(kb, (latent_dim * 2,), dtype) * 0.01
    params["mu_logvar_gen"] = (w, b)
    return params


def pack_encoder_fc_params(params, latent_dim, lane=128, compute_dtype=jnp.float32):
    """One-time layout transforms (transpose / de-interleave / 128-pad) so the
    per-call path does zero reshuffling.  Weights in compute_dtype (f32 or bf16),
    biases kept f32 (tiny, added to the f32 accumulator)."""
    in_dim = params["fc_layers"][0][0].shape[1]
    hidden = params["fc_layers"][0][0].shape[0]
    in_pad = _round_up(in_dim, lane)
    hid_pad = _round_up(hidden, lane)

    packed = []
    for li, (w, b) in enumerate(params["fc_layers"]):
        wt = jnp.asarray(w, jnp.float32).T                       # (fan_in, hidden)
        rows = in_pad if li == 0 else hid_pad
        wt = jnp.pad(wt, ((0, rows - wt.shape[0]), (0, hid_pad - wt.shape[1])))
        bt = jnp.pad(jnp.asarray(b, jnp.float32).reshape(1, -1),
                     ((0, 0), (0, hid_pad - b.shape[0])))
        packed.append(wt.astype(compute_dtype))
        packed.append(bt)                                        # f32

    w, b = params["mu_logvar_gen"]
    wt = jnp.asarray(w, jnp.float32).T                           # (hidden, 2*latent), interleaved
    bt = jnp.asarray(b, jnp.float32).reshape(1, -1)
    # De-interleave columns: mu <- 0::2, logvar <- 1::2 (matches view(-1, L, 2).unbind(-1)).
    w_dense = jnp.concatenate([wt[:, 0::2], wt[:, 1::2]], axis=1)
    b_dense = jnp.concatenate([bt[:, 0::2], bt[:, 1::2]], axis=1)
    out_pad = _round_up(max(2 * latent_dim, lane), lane)
    w_dense = jnp.pad(w_dense, ((0, hid_pad - w_dense.shape[0]),
                                (0, out_pad - 2 * latent_dim)))
    b_dense = jnp.pad(b_dense, ((0, 0), (0, out_pad - 2 * latent_dim)))
    packed.append(w_dense.astype(compute_dtype))
    packed.append(b_dense)                                       # f32
    return tuple(packed)


# --------------------------------------------------------------------------
# Forward
# --------------------------------------------------------------------------
@functools.partial(jax.jit, static_argnames=("latent_dim",))
def encoder_fc_forward(packed, x, *, latent_dim):
    """Fused Pallas implementation of EncoderFC.forward.

    x: (B, input_dim).  Returns (mu, logvar), each (B, latent_dim) in f32.
    """
    B, input_dim = x.shape
    num_linear = len(packed) // 2                    # fc_layers + mu_logvar_gen
    num_fc_layers = num_linear - 1
    in_pad = packed[0].shape[0]
    hidden_pad = packed[0].shape[1]
    out_pad = packed[-1].shape[1]
    compute_dtype = packed[0].dtype

    # One-time lane-dense pad + (optional) bf16 cast of x, outside the kernel.
    if input_dim != in_pad or x.dtype != compute_dtype:
        x = jnp.pad(x.astype(compute_dtype), ((0, 0), (0, in_pad - input_dim)))

    cfg = _tpu_config()
    param_bytes = sum(int(p.size) * p.dtype.itemsize for p in packed)   # Buffered(1): counted once
    x_itemsize = jnp.dtype(x.dtype).itemsize
    tb = _pick_batch_tile(B, in_pad, hidden_pad, out_pad, param_bytes, x_itemsize,
                          cfg["vmem_budget"], cfg["mxu_m"], cfg["two_cores"])
    grid = (pl.cdiv(B, tb),)

    # NOTE: when B % tb != 0 the trailing partial x block contains unspecified
    # padding rows; every op here is row-independent, so any garbage stays in
    # rows the wrapper never returns.  Don't add row-wise reductions here.
    in_specs = [pl.BlockSpec((tb, in_pad), lambda i: (i, 0))]            # batch-tiled x
    for p in packed:                                                      # VMEM-resident params,
        in_specs.append(pl.BlockSpec(p.shape, lambda i: (0, 0),          # single-buffered
                                     pipeline_mode=pl.Buffered(1)))
    out_spec = pl.BlockSpec((tb, out_pad), lambda i: (i, 0))              # lane-dense output

    if cfg["two_cores"] and grid[0] >= 2:
        dim_semantics = (pltpu.CORE_PARALLEL,)       # split batch across v7x's 2 TCs
    else:
        dim_semantics = ("parallel",)

    flops = 2 * B * (in_pad * hidden_pad
                     + max(num_fc_layers - 1, 0) * hidden_pad * hidden_pad
                     + hidden_pad * out_pad)
    bytes_accessed = B * in_pad * x_itemsize + param_bytes + B * out_pad * 4

    out = pl.pallas_call(
        _encoder_fc_kernel,
        out_shape=jax.ShapeDtypeStruct((B, out_pad), jnp.float32),
        grid_spec=pltpu.PrefetchScalarGridSpec(
            num_scalar_prefetch=0,
            grid=grid,
            in_specs=in_specs,
            out_specs=out_spec,
        ),
        compiler_params=pltpu.CompilerParams(
            dimension_semantics=dim_semantics,
            vmem_limit_bytes=cfg["vmem_limit"]),
        cost_estimate=pl.CostEstimate(flops=int(flops), transcendentals=0,
                                      bytes_accessed=int(bytes_accessed)),
    )(x, *packed)

    # Contiguous static slices (no strided lane-gather thanks to the packed weight).
    mu = out[:, :latent_dim]
    logvar = out[:, latent_dim:2 * latent_dim]
    return mu, logvar


def encoder_fc_reference(params, x, latent_dim):
    """Pure-JAX reference mirroring the PyTorch forward."""
    h = x
    for (w, b) in params["fc_layers"]:
        h = jax.nn.relu(h @ w.T + b)
    w, b = params["mu_logvar_gen"]
    ml = (h @ w.T + b).reshape(-1, latent_dim, 2)
    return ml[..., 0], ml[..., 1]


if __name__ == "__main__":
    # Small shapes consistent with the module's flattened-vector input.
    batch = 2
    input_dim = 64
    hidden_dim = 32
    latent_dim = 10
    num_layers = 2    # exercises the multi-layer fused path

    key = jax.random.PRNGKey(0)
    key, kx, kp = jax.random.split(key, 3)
    x = jax.random.normal(kx, (batch, input_dim), jnp.float32)
    params = init_encoder_fc_params(kp, input_dim, latent_dim=latent_dim,
                                    hidden_dim=hidden_dim, num_layers=num_layers)
    mu_ref, logvar_ref = encoder_fc_reference(params, x, latent_dim)

    # --- f32 path (tight tolerance) -------------------------------------
    packed_f32 = pack_encoder_fc_params(params, latent_dim, compute_dtype=jnp.float32)
    mu, logvar = encoder_fc_forward(packed_f32, x, latent_dim=latent_dim)
    mu = jax.block_until_ready(mu)
    logvar = jax.block_until_ready(logvar)
    assert mu.shape == (batch, latent_dim) and logvar.shape == (batch, latent_dim)
    assert jnp.allclose(mu, mu_ref, atol=1e-5, rtol=1e-5)
    assert jnp.allclose(logvar, logvar_ref, atol=1e-5, rtol=1e-5)

    # --- bf16 storage/transfer path (halves HBM traffic; f32 accumulation) ---
    packed_bf16 = pack_encoder_fc_params(params, latent_dim, compute_dtype=jnp.bfloat16)
    mu_b, logvar_b = encoder_fc_forward(packed_bf16, x, latent_dim=latent_dim)
    mu_b = jax.block_until_ready(mu_b)
    logvar_b = jax.block_until_ready(logvar_b)
    assert jnp.allclose(mu_b, mu_ref, atol=5e-2, rtol=5e-2)
    assert jnp.allclose(logvar_b, logvar_ref, atol=5e-2, rtol=5e-2)

    print("KERNEL_OK")
</pallas_src>

<mosaic_0001>
module attributes {stable_mosaic.version = 11 : i64} {
  func.func @_encoder_fc_kernel(%arg0: i32, %arg1: memref<2x128xf32, #tpu.memory_space<vmem>>, %arg2: memref<128x128xf32, #tpu.memory_space<vmem>>, %arg3: memref<1x128xf32, #tpu.memory_space<vmem>>, %arg4: memref<128x128xf32, #tpu.memory_space<vmem>>, %arg5: memref<1x128xf32, #tpu.memory_space<vmem>>, %arg6: memref<128x128xf32, #tpu.memory_space<vmem>>, %arg7: memref<1x128xf32, #tpu.memory_space<vmem>>, %arg8: memref<2x128xf32, #tpu.memory_space<vmem>>) attributes {dimension_semantics = [#tpu.dimension_semantics<parallel>], iteration_bounds = array<i64: 1>, scalar_prefetch = 0 : i64, scratch_operands = 0 : i64, tpu.core_type = #tpu.core_type<tc>, window_params = [{transform_indices = @transform_0, window_bounds = array<i64: 2, 128>}, {pipeline_mode = #tpu.pipeline_mode<synchronous>, transform_indices = @transform_1, window_bounds = array<i64: 128, 128>}, {pipeline_mode = #tpu.pipeline_mode<synchronous>, transform_indices = @transform_2, window_bounds = array<i64: 1, 128>}, {pipeline_mode = #tpu.pipeline_mode<synchronous>, transform_indices = @transform_3, window_bounds = array<i64: 128, 128>}, {pipeline_mode = #tpu.pipeline_mode<synchronous>, transform_indices = @transform_4, window_bounds = array<i64: 1, 128>}, {pipeline_mode = #tpu.pipeline_mode<synchronous>, transform_indices = @transform_5, window_bounds = array<i64: 128, 128>}, {pipeline_mode = #tpu.pipeline_mode<synchronous>, transform_indices = @transform_6, window_bounds = array<i64: 1, 128>}, {transform_indices = @transform_7, window_bounds = array<i64: 2, 128>}]} {
    %c0 = arith.constant 0 : index
    %c0_0 = arith.constant 0 : index
    %0 = vector.load %arg1[%c0, %c0_0] : memref<2x128xf32, #tpu.memory_space<vmem>>, vector<2x128xf32>
    %c0_1 = arith.constant 0 : index
    %c0_2 = arith.constant 0 : index
    %1 = vector.load %arg2[%c0_1, %c0_2] : memref<128x128xf32, #tpu.memory_space<vmem>>, vector<128x128xf32>
    %c0_3 = arith.constant 0 : index
    %c0_4 = arith.constant 0 : index
    %2 = vector.load %arg3[%c0_3, %c0_4] : memref<1x128xf32, #tpu.memory_space<vmem>>, vector<1x128xf32>
    %cst = arith.constant dense<0.000000e+00> : vector<2x128xf32>
    %3 = tpu.matmul %0, %1, %cst {dimension_numbers = #tpu.dot_dimension_numbers<[1], [0], [0], [1], [0, 0, 1, 1], [], []>} : vector<2x128xf32>, vector<128x128xf32>, vector<2x128xf32> -> vector<2x128xf32>
    %4 = vector.broadcast %2 : vector<1x128xf32> to vector<2x128xf32>
    %5 = arith.addf %3, %4 : vector<2x128xf32>
    %cst_5 = arith.constant 0.000000e+00 : f32
    %6 = vector.broadcast %cst_5 : f32 to vector<2x128xf32>
    %7 = arith.maximumf %5, %6 : vector<2x128xf32>
    %c0_6 = arith.constant 0 : index
    %c0_7 = arith.constant 0 : index
    %8 = vector.load %arg4[%c0_6, %c0_7] : memref<128x128xf32, #tpu.memory_space<vmem>>, vector<128x128xf32>
    %c0_8 = arith.constant 0 : index
    %c0_9 = arith.constant 0 : index
    %9 = vector.load %arg5[%c0_8, %c0_9] : memref<1x128xf32, #tpu.memory_space<vmem>>, vector<1x128xf32>
    %cst_10 = arith.constant dense<0.000000e+00> : vector<2x128xf32>
    %10 = tpu.matmul %7, %8, %cst_10 {dimension_numbers = #tpu.dot_dimension_numbers<[1], [0], [0], [1], [0, 0, 1, 1], [], []>} : vector<2x128xf32>, vector<128x128xf32>, vector<2x128xf32> -> vector<2x128xf32>
    %11 = vector.broadcast %9 : vector<1x128xf32> to vector<2x128xf32>
    %12 = arith.addf %10, %11 : vector<2x128xf32>
    %cst_11 = arith.constant 0.000000e+00 : f32
    %13 = vector.broadcast %cst_11 : f32 to vector<2x128xf32>
    %14 = arith.maximumf %12, %13 : vector<2x128xf32>
    %c0_12 = arith.constant 0 : index
    %c0_13 = arith.constant 0 : index
    %15 = vector.load %arg6[%c0_12, %c0_13] : memref<128x128xf32, #tpu.memory_space<vmem>>, vector<128x128xf32>
    %c0_14 = arith.constant 0 : index
    %c0_15 = arith.constant 0 : index
    %16 = vector.load %arg7[%c0_14, %c0_15] : memref<1x128xf32, #tpu.memory_space<vmem>>, vector<1x128xf32>
    %cst_16 = arith.constant dense<0.000000e+00> : vector<2x128xf32>
    %17 = tpu.matmul %14, %15, %cst_16 {dimension_numbers = #tpu.dot_dimension_numbers<[1], [0], [0], [1], [0, 0, 1, 1], [], []>} : vector<2x128xf32>, vector<128x128xf32>, vector<2x128xf32> -> vector<2x128xf32>
    %18 = vector.broadcast %16 : vector<1x128xf32> to vector<2x128xf32>
    %19 = arith.addf %17, %18 : vector<2x128xf32>
    %c0_17 = arith.constant 0 : index
    %c0_18 = arith.constant 0 : index
    %20 = vector.load %arg8[%c0_17, %c0_18] : memref<2x128xf32, #tpu.memory_space<vmem>>, vector<2x128xf32>
    tpu.vector_store %arg8[%c0_17, %c0_18], %19 {strides = array<i32>} : memref<2x128xf32, #tpu.memory_space<vmem>>, vector<2x128xf32>,
    return
  }
  func.func @transform_0(%arg0: i32) -> (i32, i32) {
    %c0_i32 = arith.constant 0 : i32
    %c0_i32_0 = arith.constant 0 : i32
    return %arg0, %c0_i32 : i32, i32
  }
  func.func @transform_1(%arg0: i32) -> (i32, i32) {
    %c0_i32 = arith.constant 0 : i32
    %c0_i32_0 = arith.constant 0 : i32
    %c0_i32_1 = arith.constant 0 : i32
    return %c0_i32, %c0_i32_0 : i32, i32
  }
  func.func @transform_2(%arg0: i32) -> (i32, i32) {
    %c0_i32 = arith.constant 0 : i32
    %c0_i32_0 = arith.constant 0 : i32
    %c0_i32_1 = arith.constant 0 : i32
    return %c0_i32, %c0_i32_0 : i32, i32
  }
  func.func @transform_3(%arg0: i32) -> (i32, i32) {
    %c0_i32 = arith.constant 0 : i32
    %c0_i32_0 = arith.constant 0 : i32
    %c0_i32_1 = arith.constant 0 : i32
    return %c0_i32, %c0_i32_0 : i32, i32
  }
  func.func @transform_4(%arg0: i32) -> (i32, i32) {
    %c0_i32 = arith.constant 0 : i32
    %c0_i32_0 = arith.constant 0 : i32
    %c0_i32_1 = arith.constant 0 : i32
    return %c0_i32, %c0_i32_0 : i32, i32
  }
  func.func @transform_5(%arg0: i32) -> (i32, i32) {
    %c0_i32 = arith.constant 0 : i32
    %c0_i32_0 = arith.constant 0 : i32
    %c0_i32_1 = arith.constant 0 : i32
    return %c0_i32, %c0_i32_0 : i32, i32
  }
  func.func @transform_6(%arg0: i32) -> (i32, i32) {
    %c0_i32 = arith.constant 0 : i32
    %c0_i32_0 = arith.constant 0 : i32
    %c0_i32_1 = arith.constant 0 : i32
    return %c0_i32, %c0_i32_0 : i32, i32
  }
  func.func @transform_7(%arg0: i32) -> (i32, i32) {
    %c0_i32 = arith.constant 0 : i32
    %c0_i32_0 = arith.constant 0 : i32
    return %arg0, %c0_i32 : i32, i32
  }
}

</mosaic_0001>

<llo_original>
// kernel: encoder_fc_forward.1
$region0: #{encoder_fc_forward.1}
  #allocation0 [shape = 'u32[]', space=smem, size = 0x4, offset = 0x4, fixed_abs, tag = 'smem constant byte address 0x4 - core index']
  #allocation1 [shape = 'u32[144,128]{1,0:T(1,128)}', space=vmem, size = 0x12000, scoped, tag = 'internal scratch']
  %s0 = inlined_call_operand.hbm [shape: f32[2,128], index: 0, kind: input, shape index: {}]
  %s1 = inlined_call_operand.hbm [shape: f32[128,128], index: 1, kind: input, shape index: {}]
  %s2 = inlined_call_operand.hbm [shape: f32[1,128], index: 2, kind: input, shape index: {}]
  %s3 = inlined_call_operand.hbm [shape: f32[128,128], index: 3, kind: input, shape index: {}]
  %s4 = inlined_call_operand.hbm [shape: f32[1,128], index: 4, kind: input, shape index: {}]
  %s5 = inlined_call_operand.hbm [shape: f32[128,128], index: 5, kind: input, shape index: {}]
  %s6 = inlined_call_operand.hbm [shape: f32[1,128], index: 6, kind: input, shape index: {}]
  %s7 = inlined_call_operand.hbm [shape: f32[2,128], index: 7, kind: output, shape index: {}]
  %s8 = sld [smem:[#allocation0]]
  $region66: #{encoder_fc_forward.1} parent=0
    _
  %s10 = ssub.s32 1, %s8
  %s11 = scalar_select 0, %s10, %s8
  $region1: #{encoder_fc_forward.1} parent=0
    #allocation2 [shape = 'u8[1024]{0}', space=vmem, size = 0x400, scoped, tag = 'input window, operand 0, single buffered']
    #allocation3 [shape = 's32[1]{0}', space=sflag, size = 0x4, scoped, tag = 'scoped memory for encoder_fc_forward.1']
    #allocation4 [shape = 's32[1]{0}', space=sflag, size = 0x4, scoped, tag = 'scoped memory for encoder_fc_forward.1']
    #allocation5 [shape = 'u8[65536]{0}', space=vmem, size = 0x10000, scoped, tag = 'input window, operand 1, single buffered']
    #allocation6 [shape = 's32[1]{0}', space=sflag, size = 0x4, scoped, tag = 'scoped memory for encoder_fc_forward.1']
    #allocation7 [shape = 'u8[512]{0}', space=vmem, size = 0x400, scoped, tag = 'input window, operand 2, single buffered']
    #allocation8 [shape = 'u8[65536]{0}', space=vmem, size = 0x10000, scoped, tag = 'input window, operand 3, single buffered']
    #allocation9 [shape = 's32[1]{0}', space=sflag, size = 0x4, scoped, tag = 'scoped memory for encoder_fc_forward.1']
    #allocation10 [shape = 'u8[512]{0}', space=vmem, size = 0x400, scoped, tag = 'input window, operand 4, single buffered']
    #allocation11 [shape = 'u8[65536]{0}', space=vmem, size = 0x10000, scoped, tag = 'input window, operand 5, single buffered']
    #allocation12 [shape = 's32[1]{0}', space=sflag, size = 0x4, scoped, tag = 'scoped memory for encoder_fc_forward.1']
    #allocation13 [shape = 'u8[512]{0}', space=vmem, size = 0x400, scoped, tag = 'input window, operand 6, single buffered']
    #allocation14 [shape = 'u8[1024]{0}', space=vmem, size = 0x400, scoped, tag = 'output window, operand 0, single buffered']
    %12 = vsyncpa [#allocation3], 0
    %13 = vsyncpa [#allocation6], 0
    %14 = vsyncpa [#allocation9], 0
    %15 = vsyncpa [#allocation12], 0
    %16 = vsyncpa [#allocation4], 0
    // Predicated region
    $region2: #{encoder_fc_forward.1} parent=1 // pred_check
      _
    $region3: #{encoder_fc_forward.1} parent=1 // pred_check_branch
      %18 = sbr.rel (0) target = $region5
    $region4: #{encoder_fc_forward.1} parent=1 // pred_region
      %s20 = ssub.s32 32, 32
      %21 = vsyncadd [#allocation3], %s20
      %s23 = sshll.u32 [#allocation2], 4
      %s24 = int_to_ptr.vmem [resolvable:$true] %s23
      %26 = dma.hbm_to_vmem [thread:$0]  %s0, 32, %s24, [#allocation3]
    $region5: #{encoder_fc_forward.1} parent=1 // pred_fallthru
      _
    // Predicated region
    $region6: #{encoder_fc_forward.1} parent=1 // pred_check
      _
    $region7: #{encoder_fc_forward.1} parent=1 // pred_check_branch
      %28 = sbr.rel (0) target = $region9
    $region8: #{encoder_fc_forward.1} parent=1 // pred_region
      %s30 = ssub.s32 2048, 2048
      %31 = vsyncadd [#allocation6], %s30
      %s32 = sshll.u32 [#allocation5], 4
      %s33 = int_to_ptr.vmem [resolvable:$true] %s32
      %38 = dma.hbm_to_vmem [thread:$0]  %s1, 2048, %s33, [#allocation6], 128, 128, 8
    $region9: #{encoder_fc_forward.1} parent=1 // pred_fallthru
      _
    // Predicated region
    $region10: #{encoder_fc_forward.1} parent=1 // pred_check
      _
    $region11: #{encoder_fc_forward.1} parent=1 // pred_check_branch
      %40 = sbr.rel (0) target = $region13
    $region12: #{encoder_fc_forward.1} parent=1 // pred_region
      %s42 = ssub.s32 16, 16
      %43 = vsyncadd [#allocation6], %s42
      %s45 = sshll.u32 [#allocation7], 4
      %s46 = int_to_ptr.vmem [resolvable:$true] %s45
      %48 = dma.hbm_to_vmem [thread:$0]  %s2, 16, %s46, [#allocation6]
    $region13: #{encoder_fc_forward.1} parent=1 // pred_fallthru
      _
    // Predicated region
    $region14: #{encoder_fc_forward.1} parent=1 // pred_check
      _
    $region15: #{encoder_fc_forward.1} parent=1 // pred_check_branch
      %50 = sbr.rel (0) target = $region17
    $region16: #{encoder_fc_forward.1} parent=1 // pred_region
      %s52 = ssub.s32 2048, 2048
      %53 = vsyncadd [#allocation9], %s52
      %s54 = sshll.u32 [#allocation8], 4
      %s55 = int_to_ptr.vmem [resolvable:$true] %s54
      %60 = dma.hbm_to_vmem [thread:$0]  %s3, 2048, %s55, [#allocation9], 128, 128, 8
    $region17: #{encoder_fc_forward.1} parent=1 // pred_fallthru
      _
    // Predicated region
    $region18: #{encoder_fc_forward.1} parent=1 // pred_check
      _
    $region19: #{encoder_fc_forward.1} parent=1 // pred_check_branch
      %62 = sbr.rel (0) target = $region21
    $region20: #{encoder_fc_forward.1} parent=1 // pred_region
      %s64 = ssub.s32 16, 16
      %65 = vsyncadd [#allocation9], %s64
      %s67 = sshll.u32 [#allocation10], 4
      %s68 = int_to_ptr.vmem [resolvable:$true] %s67
      %70 = dma.hbm_to_vmem [thread:$0]  %s4, 16, %s68, [#allocation9]
    $region21: #{encoder_fc_forward.1} parent=1 // pred_fallthru
      _
    // Predicated region
    $region22: #{encoder_fc_forward.1} parent=1 // pred_check
      _
    $region23: #{encoder_fc_forward.1} parent=1 // pred_check_branch
      %72 = sbr.rel (0) target = $region25
    $region24: #{encoder_fc_forward.1} parent=1 // pred_region
      %s74 = ssub.s32 2048, 2048
      %75 = vsyncadd [#allocation12], %s74
      %s76 = sshll.u32 [#allocation11], 4
      %s77 = int_to_ptr.vmem [resolvable:$true] %s76
      %82 = dma.hbm_to_vmem [thread:$0]  %s5, 2048, %s77, [#allocation12], 128, 128, 8
    $region25: #{encoder_fc_forward.1} parent=1 // pred_fallthru
      _
    // Predicated region
    $region26: #{encoder_fc_forward.1} parent=1 // pred_check
      _
    $region27: #{encoder_fc_forward.1} parent=1 // pred_check_branch
      %84 = sbr.rel (0) target = $region29
    $region28: #{encoder_fc_forward.1} parent=1 // pred_region
      %s86 = ssub.s32 16, 16
      %87 = vsyncadd [#allocation12], %s86
      %s89 = sshll.u32 [#allocation13], 4
      %s90 = int_to_ptr.vmem [resolvable:$true] %s89
      %92 = dma.hbm_to_vmem [thread:$0]  %s6, 16, %s90, [#allocation12]
    $region29: #{encoder_fc_forward.1} parent=1 // pred_fallthru
      _
    // Predicated region
    $region30: #{encoder_fc_forward.1} parent=1 // pred_check
      _
    $region31: #{encoder_fc_forward.1} parent=1 // pred_check_branch
      %94 = sbr.rel (0) target = $region33
    $region32: #{encoder_fc_forward.1} parent=1 // pred_region
      %95 = dma.done [#allocation3], 32
    $region33: #{encoder_fc_forward.1} parent=1 // pred_fallthru
      _
    // Predicated region
    $region34: #{encoder_fc_forward.1} parent=1 // pred_check
      _
    $region35: #{encoder_fc_forward.1} parent=1 // pred_check_branch
      %97 = sbr.rel (0) target = $region37
    $region36: #{encoder_fc_forward.1} parent=1 // pred_region
      %98 = dma.done [#allocation6], 2048
    $region37: #{encoder_fc_forward.1} parent=1 // pred_fallthru
      _
    // Predicated region
    $region38: #{encoder_fc_forward.1} parent=1 // pred_check
      _
    $region39: #{encoder_fc_forward.1} parent=1 // pred_check_branch
      %100 = sbr.rel (0) target = $region41
    $region40: #{encoder_fc_forward.1} parent=1 // pred_region
      %101 = dma.done [#allocation6], 16
    $region41: #{encoder_fc_forward.1} parent=1 // pred_fallthru
      _
    // Predicated region
    $region42: #{encoder_fc_forward.1} parent=1 // pred_check
      _
    $region43: #{encoder_fc_forward.1} parent=1 // pred_check_branch
      %103 = sbr.rel (0) target = $region45
    $region44: #{encoder_fc_forward.1} parent=1 // pred_region
      %104 = dma.done [#allocation9], 2048
    $region45: #{encoder_fc_forward.1} parent=1 // pred_fallthru
      _
    // Predicated region
    $region46: #{encoder_fc_forward.1} parent=1 // pred_check
      _
    $region47: #{encoder_fc_forward.1} parent=1 // pred_check_branch
      %106 = sbr.rel (0) target = $region49
    $region48: #{encoder_fc_forward.1} parent=1 // pred_region
      %107 = dma.done [#allocation9], 16
    $region49: #{encoder_fc_forward.1} parent=1 // pred_fallthru
      _
    // Predicated region
    $region50: #{encoder_fc_forward.1} parent=1 // pred_check
      _
    $region51: #{encoder_fc_forward.1} parent=1 // pred_check_branch
      %109 = sbr.rel (0) target = $region53
    $region52: #{encoder_fc_forward.1} parent=1 // pred_region
      %110 = dma.done [#allocation12], 2048
    $region53: #{encoder_fc_forward.1} parent=1 // pred_fallthru
      _
    // Predicated region
    $region54: #{encoder_fc_forward.1} parent=1 // pred_check
      _
    $region55: #{encoder_fc_forward.1} parent=1 // pred_check_branch
      %112 = sbr.rel (0) target = $region57
    $region56: #{encoder_fc_forward.1} parent=1 // pred_region
      %113 = dma.done [#allocation12], 16
    $region57: #{encoder_fc_forward.1} parent=1 // pred_fallthru
      _
    %v114 = vld [vmem:[#allocation2] sm:$0x3]
    %v115 = vld [vmem:[#allocation5] sm:$0xff]
    %v116 = vld [vmem:[#allocation5 + $0x8] sm:$0xff]
    %v117 = vld [vmem:[#allocation5 + $0x10] sm:$0xff]
    %v118 = vld [vmem:[#allocation5 + $0x18] sm:$0xff]
    %v119 = vld [vmem:[#allocation5 + $0x20] sm:$0xff]
    %v120 = vld [vmem:[#allocation5 + $0x28] sm:$0xff]
    %v121 = vld [vmem:[#allocation5 + $0x30] sm:$0xff]
    %v122 = vld [vmem:[#allocation5 + $0x38] sm:$0xff]
    %v123 = vld [vmem:[#allocation5 + $0x40] sm:$0xff]
    %v124 = vld [vmem:[#allocation5 + $0x48] sm:$0xff]
    %v125 = vld [vmem:[#allocation5 + $0x50] sm:$0xff]
    %v126 = vld [vmem:[#allocation5 + $0x58] sm:$0xff]
    %v127 = vld [vmem:[#allocation5 + $0x60] sm:$0xff]
    %v128 = vld [vmem:[#allocation5 + $0x68] sm:$0xff]
    %v129 = vld [vmem:[#allocation5 + $0x70] sm:$0xff]
    %v130 = vld [vmem:[#allocation5 + $0x78] sm:$0xff]
    %v131 = vld [vmem:[#allocation7] sm:$0x1]
    %v133 = vlaneseq
    %v134 = vshrl.u32 %v133, 7
    %v135 = vsub.s32 0, %v134
    %v136 = vrot.slane %v131, %v135
    %138 = vmatprep.subr.mxu0 0.0
    %139 = vmatpush1.msra.mxu0 %v115
    %140 = vmatprep.subr.mxu0 0.0
    %141 = vmatpush1.msra.mxu0 %v116
    %142 = vmatprep.subr.mxu0 0.0
    %143 = vmatpush1.msra.mxu0 %v117
    %144 = vmatprep.subr.mxu0 0.0
    %145 = vmatpush1.msra.mxu0 %v118
    %146 = vmatprep.subr.mxu0 0.0
    %147 = vmatpush1.msra.mxu0 %v119
    %148 = vmatprep.subr.mxu0 0.0
    %149 = vmatpush1.msra.mxu0 %v120
    %150 = vmatprep.subr.mxu0 0.0
    %151 = vmatpush1.msra.mxu0 %v121
    %152 = vmatprep.subr.mxu0 0.0
    %153 = vmatpush1.msra.mxu0 %v122
    %154 = vmatprep.subr.mxu0 0.0
    %155 = vmatpush1.msra.mxu0 %v123
    %156 = vmatprep.subr.mxu0 0.0
    %157 = vmatpush1.msra.mxu0 %v124
    %158 = vmatprep.subr.mxu0 0.0
    %159 = vmatpush1.msra.mxu0 %v125
    %160 = vmatprep.subr.mxu0 0.0
    %161 = vmatpush1.msra.mxu0 %v126
    %162 = vmatprep.subr.mxu0 0.0
    %163 = vmatpush1.msra.mxu0 %v127
    %164 = vmatprep.subr.mxu0 0.0
    %165 = vmatpush1.msra.mxu0 %v128
    %166 = vmatprep.subr.mxu0 0.0
    %167 = vmatpush1.msra.mxu0 %v129
    %168 = vmatprep.subr.mxu0 0.0
    %169 = vmatpush1.msra.mxu0 %v130
    %170 = vmatprep.subr.mxu0 0.0
    %171 = vmatpush1.msra.mxu0 0.0
    %172 = vmatprep.subr.mxu0 0.0
    %173 = vmatpush1.msra.mxu0 0.0
    %174 = vmatprep.subr.mxu0 0.0
    %175 = vmatpush1.msra.mxu0 0.0
    %176 = vmatprep.subr.mxu0 0.0
    %177 = vmatpush1.msra.mxu0 0.0
    %178 = vmatprep.subr.mxu0 0.0
    %179 = vmatpush1.msra.mxu0 0.0
    %180 = vmatprep.subr.mxu0 0.0
    %181 = vmatpush1.msra.mxu0 0.0
    %182 = vmatprep.subr.mxu0 0.0
    %183 = vmatpush1.msra.mxu0 0.0
    %184 = vmatprep.subr.mxu0 0.0
    %185 = vmatpush1.msra.mxu0 0.0
    %186 = vmatprep.subr.mxu0 0.0
    %187 = vmatpush1.msra.mxu0 0.0
    %188 = vmatprep.subr.mxu0 0.0
    %189 = vmatpush1.msra.mxu0 0.0
    %190 = vmatprep.subr.mxu0 0.0
    %191 = vmatpush1.msra.mxu0 0.0
    %192 = vmatprep.subr.mxu0 0.0
    %193 = vmatpush1.msra.mxu0 0.0
    %194 = vmatprep.subr.mxu0 0.0
    %195 = vmatpush1.msra.mxu0 0.0
    %196 = vmatprep.subr.mxu0 0.0
    %197 = vmatpush1.msra.mxu0 0.0
    %198 = vmatprep.subr.mxu0 0.0
    %199 = vmatpush1.msra.mxu0 0.0
    %200 = vmatprep.subr.mxu0 0.0
    %201 = vmatpush1.msra.mxu0 0.0
    %202 = vmatprep.mubr.f32.mxu0 0.0
    %203 = vmatmul.mubr.f32.gmra.mrb[0].mxu0 %v114
    %v204 = vpop.f32.mrb[0].mxu0
    %v205 = vadd.f32 %v136, %v204
    %v206 = vpop.f32.mrb[0].mxu0
    %207 = vdwg.mxu0
    %v208 = vmax.f32 %v205, 0.0
    %v209 = vld [vmem:[#allocation8] sm:$0xff]
    %v210 = vld [vmem:[#allocation8 + $0x8] sm:$0xff]
    %v211 = vld [vmem:[#allocation8 + $0x10] sm:$0xff]
    %v212 = vld [vmem:[#allocation8 + $0x18] sm:$0xff]
    %v213 = vld [vmem:[#allocation8 + $0x20] sm:$0xff]
    %v214 = vld [vmem:[#allocation8 + $0x28] sm:$0xff]
    %v215 = vld [vmem:[#allocation8 + $0x30] sm:$0xff]
    %v216 = vld [vmem:[#allocation8 + $0x38] sm:$0xff]
    %v217 = vld [vmem:[#allocation8 + $0x40] sm:$0xff]
    %v218 = vld [vmem:[#allocation8 + $0x48] sm:$0xff]
    %v219 = vld [vmem:[#allocation8 + $0x50] sm:$0xff]
    %v220 = vld [vmem:[#allocation8 + $0x58] sm:$0xff]
    %v221 = vld [vmem:[#allocation8 + $0x60] sm:$0xff]
    %v222 = vld [vmem:[#allocation8 + $0x68] sm:$0xff]
    %v223 = vld [vmem:[#allocation8 + $0x70] sm:$0xff]
    %v224 = vld [vmem:[#allocation8 + $0x78] sm:$0xff]
    %v225 = vld [vmem:[#allocation10] sm:$0x1]
    %v227 = vlaneseq
    %v228 = vshrl.u32 %v227, 7
    %v229 = vsub.s32 0, %v228
    %v230 = vrot.slane %v225, %v229
    %232 = vmatprep.subr.mxu0 0.0
    %233 = vmatpush1.msra.mxu0 %v209
    %234 = vmatprep.subr.mxu0 0.0
    %235 = vmatpush1.msra.mxu0 %v210
    %236 = vmatprep.subr.mxu0 0.0
    %237 = vmatpush1.msra.mxu0 %v211
    %238 = vmatprep.subr.mxu0 0.0
    %239 = vmatpush1.msra.mxu0 %v212
    %240 = vmatprep.subr.mxu0 0.0
    %241 = vmatpush1.msra.mxu0 %v213
    %242 = vmatprep.subr.mxu0 0.0
    %243 = vmatpush1.msra.mxu0 %v214
    %244 = vmatprep.subr.mxu0 0.0
    %245 = vmatpush1.msra.mxu0 %v215
    %246 = vmatprep.subr.mxu0 0.0
    %247 = vmatpush1.msra.mxu0 %v216
    %248 = vmatprep.subr.mxu0 0.0
    %249 = vmatpush1.msra.mxu0 %v217
    %250 = vmatprep.subr.mxu0 0.0
    %251 = vmatpush1.msra.mxu0 %v218
    %252 = vmatprep.subr.mxu0 0.0
    %253 = vmatpush1.msra.mxu0 %v219
    %254 = vmatprep.subr.mxu0 0.0
    %255 = vmatpush1.msra.mxu0 %v220
    %256 = vmatprep.subr.mxu0 0.0
    %257 = vmatpush1.msra.mxu0 %v221
    %258 = vmatprep.subr.mxu0 0.0
    %259 = vmatpush1.msra.mxu0 %v222
    %260 = vmatprep.subr.mxu0 0.0
    %261 = vmatpush1.msra.mxu0 %v223
    %262 = vmatprep.subr.mxu0 0.0
    %263 = vmatpush1.msra.mxu0 %v224
    %264 = vmatprep.subr.mxu0 0.0
    %265 = vmatpush1.msra.mxu0 0.0
    %266 = vmatprep.subr.mxu0 0.0
    %267 = vmatpush1.msra.mxu0 0.0
    %268 = vmatprep.subr.mxu0 0.0
    %269 = vmatpush1.msra.mxu0 0.0
    %270 = vmatprep.subr.mxu0 0.0
    %271 = vmatpush1.msra.mxu0 0.0
    %272 = vmatprep.subr.mxu0 0.0
    %273 = vmatpush1.msra.mxu0 0.0
    %274 = vmatprep.subr.mxu0 0.0
    %275 = vmatpush1.msra.mxu0 0.0
    %276 = vmatprep.subr.mxu0 0.0
    %277 = vmatpush1.msra.mxu0 0.0
    %278 = vmatprep.subr.mxu0 0.0
    %279 = vmatpush1.msra.mxu0 0.0
    %280 = vmatprep.subr.mxu0 0.0
    %281 = vmatpush1.msra.mxu0 0.0
    %282 = vmatprep.subr.mxu0 0.0
    %283 = vmatpush1.msra.mxu0 0.0
    %284 = vmatprep.subr.mxu0 0.0
    %285 = vmatpush1.msra.mxu0 0.0
    %286 = vmatprep.subr.mxu0 0.0
    %287 = vmatpush1.msra.mxu0 0.0
    %288 = vmatprep.subr.mxu0 0.0
    %289 = vmatpush1.msra.mxu0 0.0
    %290 = vmatprep.subr.mxu0 0.0
    %291 = vmatpush1.msra.mxu0 0.0
    %292 = vmatprep.subr.mxu0 0.0
    %293 = vmatpush1.msra.mxu0 0.0
    %294 = vmatprep.subr.mxu0 0.0
    %295 = vmatpush1.msra.mxu0 0.0
    %296 = vmatprep.mubr.f32.mxu0 0.0
    %297 = vmatmul.mubr.f32.gmra.mrb[0].mxu0 %v208
    %v298 = vpop.f32.mrb[0].mxu0
    %v299 = vadd.f32 %v230, %v298
    %v300 = vpop.f32.mrb[0].mxu0
    %301 = vdwg.mxu0
    %v302 = vmax.f32 %v299, 0.0
    %v303 = vld [vmem:[#allocation11] sm:$0xff]
    %v304 = vld [vmem:[#allocation11 + $0x8] sm:$0xff]
    %v305 = vld [vmem:[#allocation11 + $0x10] sm:$0xff]
    %v306 = vld [vmem:[#allocation11 + $0x18] sm:$0xff]
    %v307 = vld [vmem:[#allocation11 + $0x20] sm:$0xff]
    %v308 = vld [vmem:[#allocation11 + $0x28] sm:$0xff]
    %v309 = vld [vmem:[#allocation11 + $0x30] sm:$0xff]
    %v310 = vld [vmem:[#allocation11 + $0x38] sm:$0xff]
    %v311 = vld [vmem:[#allocation11 + $0x40] sm:$0xff]
    %v312 = vld [vmem:[#allocation11 + $0x48] sm:$0xff]
    %v313 = vld [vmem:[#allocation11 + $0x50] sm:$0xff]
    %v314 = vld [vmem:[#allocation11 + $0x58] sm:$0xff]
    %v315 = vld [vmem:[#allocation11 + $0x60] sm:$0xff]
    %v316 = vld [vmem:[#allocation11 + $0x68] sm:$0xff]
    %v317 = vld [vmem:[#allocation11 + $0x70] sm:$0xff]
    %v318 = vld [vmem:[#allocation11 + $0x78] sm:$0xff]
    %v319 = vld [vmem:[#allocation13] sm:$0x1]
    %v321 = vlaneseq
    %v322 = vshrl.u32 %v321, 7
    %v323 = vsub.s32 0, %v322
    %v324 = vrot.slane %v319, %v323
    %326 = vmatprep.subr.mxu0 0.0
    %327 = vmatpush1.msra.mxu0 %v303
    %328 = vmatprep.subr.mxu0 0.0
    %329 = vmatpush1.msra.mxu0 %v304
    %330 = vmatprep.subr.mxu0 0.0
    %331 = vmatpush1.msra.mxu0 %v305
    %332 = vmatprep.subr.mxu0 0.0
    %333 = vmatpush1.msra.mxu0 %v306
    %334 = vmatprep.subr.mxu0 0.0
    %335 = vmatpush1.msra.mxu0 %v307
    %336 = vmatprep.subr.mxu0 0.0
    %337 = vmatpush1.msra.mxu0 %v308
    %338 = vmatprep.subr.mxu0 0.0
    %339 = vmatpush1.msra.mxu0 %v309
    %340 = vmatprep.subr.mxu0 0.0
    %341 = vmatpush1.msra.mxu0 %v310
    %342 = vmatprep.subr.mxu0 0.0
    %343 = vmatpush1.msra.mxu0 %v311
    %344 = vmatprep.subr.mxu0 0.0
    %345 = vmatpush1.msra.mxu0 %v312
    %346 = vmatprep.subr.mxu0 0.0
    %347 = vmatpush1.msra.mxu0 %v313
    %348 = vmatprep.subr.mxu0 0.0
    %349 = vmatpush1.msra.mxu0 %v314
    %350 = vmatprep.subr.mxu0 0.0
    %351 = vmatpush1.msra.mxu0 %v315
    %352 = vmatprep.subr.mxu0 0.0
    %353 = vmatpush1.msra.mxu0 %v316
    %354 = vmatprep.subr.mxu0 0.0
    %355 = vmatpush1.msra.mxu0 %v317
    %356 = vmatprep.subr.mxu0 0.0
    %357 = vmatpush1.msra.mxu0 %v318
    %358 = vmatprep.subr.mxu0 0.0
    %359 = vmatpush1.msra.mxu0 0.0
    %360 = vmatprep.subr.mxu0 0.0
    %361 = vmatpush1.msra.mxu0 0.0
    %362 = vmatprep.subr.mxu0 0.0
    %363 = vmatpush1.msra.mxu0 0.0
    %364 = vmatprep.subr.mxu0 0.0
    %365 = vmatpush1.msra.mxu0 0.0
    %366 = vmatprep.subr.mxu0 0.0
    %367 = vmatpush1.msra.mxu0 0.0
    %368 = vmatprep.subr.mxu0 0.0
    %369 = vmatpush1.msra.mxu0 0.0
    %370 = vmatprep.subr.mxu0 0.0
    %371 = vmatpush1.msra.mxu0 0.0
    %372 = vmatprep.subr.mxu0 0.0
    %373 = vmatpush1.msra.mxu0 0.0
    %374 = vmatprep.subr.mxu0 0.0
    %375 = vmatpush1.msra.mxu0 0.0
    %376 = vmatprep.subr.mxu0 0.0
    %377 = vmatpush1.msra.mxu0 0.0
    %378 = vmatprep.subr.mxu0 0.0
    %379 = vmatpush1.msra.mxu0 0.0
    %380 = vmatprep.subr.mxu0 0.0
    %381 = vmatpush1.msra.mxu0 0.0
    %382 = vmatprep.subr.mxu0 0.0
    %383 = vmatpush1.msra.mxu0 0.0
    %384 = vmatprep.subr.mxu0 0.0
    %385 = vmatpush1.msra.mxu0 0.0
    %386 = vmatprep.subr.mxu0 0.0
    %387 = vmatpush1.msra.mxu0 0.0
    %388 = vmatprep.subr.mxu0 0.0
    %389 = vmatpush1.msra.mxu0 0.0
    %390 = vmatprep.mubr.f32.mxu0 0.0
    %391 = vmatmul.mubr.f32.gmra.mrb[0].mxu0 %v302
    %v392 = vpop.f32.mrb[0].mxu0
    %v393 = vadd.f32 %v324, %v392
    %v394 = vpop.f32.mrb[0].mxu0
    %395 = vdwg.mxu0
    %396 = vst [vmem:[#allocation14] sm:$0x3] %v393
    // Predicated region
    $region58: #{encoder_fc_forward.1} parent=1 // pred_check
      _
    $region59: #{encoder_fc_forward.1} parent=1 // pred_check_branch
      %398 = sbr.rel (0) target = $region61
    $region60: #{encoder_fc_forward.1} parent=1 // pred_region
      %s400 = ssub.s32 32, 32
      %401 = vsyncadd [#allocation4], %s400
      %s403 = sshll.u32 [#allocation14], 4
      %s404 = int_to_ptr.vmem [resolvable:$true] %s403
      %406 = dma.vmem_to_hbm [thread:$0]  %s404, 32, %s7, [#allocation4]
    $region61: #{encoder_fc_forward.1} parent=1 // pred_fallthru
      _
    // Predicated region
    $region62: #{encoder_fc_forward.1} parent=1 // pred_check
      _
    $region63: #{encoder_fc_forward.1} parent=1 // pred_check_branch
      %408 = sbr.rel (0) target = $region65
    $region64: #{encoder_fc_forward.1} parent=1 // pred_region
      %409 = dma.done [#allocation4], 32
    $region65: #{encoder_fc_forward.1} parent=1 // pred_fallthru
      _
    %410 = vsyncpa [#allocation3], 1
    %411 = vsyncpa [#allocation6], 1
    %412 = vsyncpa [#allocation9], 1
    %413 = vsyncpa [#allocation12], 1
    %414 = vsyncpa [#allocation4], 1

</llo_original>
